<compile_context>
chip_gen: v7x
topology: tpu7x:2x2x1
jax: 0.10.0
libtpu: 0.0.40
codegen_flags: <defaults>
</compile_context>

<pallas_src>
import functools

import jax
import jax.numpy as jnp
from jax import lax
from jax.experimental import pallas as pl
from jax.experimental.pallas import tpu as pltpu

LN_EPS = 1e-5


def _tpu_config():
    """TPU-generation-aware tile targets and VMEM limit."""
    vmem = 128 * 1024 * 1024
    try:
        vmem = int(pltpu.get_tpu_info().vmem_capacity_bytes)
    except Exception:
        pass
    if vmem <= 64 * 1024 * 1024:
        # v7x-class TensorCore: 64 MiB physical VMEM -> smaller tiles, headroom.
        return dict(tm=128, tn=256, tk=256, tq=256, tkv=256,
                    tm_head=256, vmem_limit=48 * 1024 * 1024)
    # v5e / v6e: 128 MiB VMEM -> larger row tiles (less weight re-streaming).
    return dict(tm=512, tn=512, tk=512, tq=256, tkv=256,
                tm_head=1024, vmem_limit=64 * 1024 * 1024)


CFG = _tpu_config()


def _tile(dim, target, align):
    """Largest tile <= target dividing dim, preferring `align` multiples.
    If dim <= target, the full dimension is used (always a legal block)."""
    if dim <= target:
        return dim
    t = (target // align) * align
    while t >= align:
        if dim % t == 0:
            return t
        t -= align
    t = min(dim, target)
    while dim % t:
        t -= 1
    return t


# ----------------------------------------------------------------------------
# Shared LN helper: write [LN(xr) | LN(xi)] into a (tm, 2C) bf16 VMEM scratch.
# ----------------------------------------------------------------------------
def _ln_into_scratch(xr_ref, xi_ref, g_ref, b_ref, hc_ref):
    C = xr_ref.shape[1]
    g = g_ref[...].astype(jnp.float32)
    b = b_ref[...].astype(jnp.float32)

    def ln(v):
        v = v.astype(jnp.float32)
        mu = jnp.mean(v, axis=-1, keepdims=True)
        var = jnp.mean(jnp.square(v - mu), axis=-1, keepdims=True)
        return (v - mu) * lax.rsqrt(var + LN_EPS) * g + b

    hc_ref[:, :C] = ln(xr_ref[...]).astype(hc_ref.dtype)
    hc_ref[:, C:] = ln(xi_ref[...]).astype(hc_ref.dtype)


# ----------------------------------------------------------------------------
# Kernel A (2D): fused ComplexLayerNorm + packed linear (+ optional ReLU).
# Packed weight (2C, N); LN'd activation cached in VMEM at j==0 and reused
# across all N tiles of the same row block.  Used for fc1 and the lm_head.
# ----------------------------------------------------------------------------
def _ln_linear_kernel(xr_ref, xi_ref, g_ref, b_ref, w_ref, bias_ref, y_ref,
                      hc_ref, *, relu):
    @pl.when(pl.program_id(1) == 0)
    def _():
        _ln_into_scratch(xr_ref, xi_ref, g_ref, b_ref, hc_ref)

    y = jnp.dot(hc_ref[...], w_ref[...], preferred_element_type=jnp.float32)
    y = y + bias_ref[...].astype(jnp.float32)
    if relu:
        y = jnp.maximum(y, 0.0)
    y_ref[...] = y.astype(y_ref.dtype)


def ln_linear(xr, xi, g, b, layer, *, relu=False, out_dtype=jnp.bfloat16,
              tm_target=None):
    M, C = xr.shape
    N = layer["w"].shape[1]
    tm = _tile(M, tm_target if tm_target is not None else CFG["tm"], 8)
    tn = _tile(N, CFG["tn"], 128)
    grid = (M // tm, N // tn)
    return pl.pallas_call(
        functools.partial(_ln_linear_kernel, relu=relu),
        out_shape=jax.ShapeDtypeStruct((M, N), out_dtype),
        grid=grid,
        in_specs=[
            pl.BlockSpec((tm, C), lambda i, j: (i, 0)),
            pl.BlockSpec((tm, C), lambda i, j: (i, 0)),
            pl.BlockSpec((1, C), lambda i, j: (0, 0)),
            pl.BlockSpec((1, C), lambda i, j: (0, 0)),
            pl.BlockSpec((2 * C, tn), lambda i, j: (0, j)),
            pl.BlockSpec((1, tn), lambda i, j: (0, j)),
        ],
        out_specs=pl.BlockSpec((tm, tn), lambda i, j: (i, j)),
        scratch_shapes=[pltpu.VMEM((tm, 2 * C), jnp.bfloat16)],
        compiler_params=pltpu.CompilerParams(
            dimension_semantics=("parallel", "arbitrary"),
            vmem_limit_bytes=CFG["vmem_limit"]),
    )(xr, xi, g, b, layer["w"], layer["b"])


# ----------------------------------------------------------------------------
# Kernel A' (3D): fused LN1 + QKV.  Output (3, M, 2C): sections Q/K/V, with
# per-head packed [real hd | imag hd] output columns, so attention can index
# it directly (no split_heads transpose).
# ----------------------------------------------------------------------------
def _ln_qkv_kernel(xr_ref, xi_ref, g_ref, b_ref, w_ref, bias_ref, y_ref,
                   hc_ref):
    first = jnp.logical_and(pl.program_id(1) == 0, pl.program_id(2) == 0)

    @pl.when(first)
    def _():
        _ln_into_scratch(xr_ref, xi_ref, g_ref, b_ref, hc_ref)

    y = jnp.dot(hc_ref[...], w_ref[0], preferred_element_type=jnp.float32)
    y = y + bias_ref[0].astype(jnp.float32)
    y_ref[0] = y.astype(y_ref.dtype)


def ln_qkv_projection(xr, xi, g, b, layer):
    M, C = xr.shape
    N2 = 2 * C
    tm = _tile(M, CFG["tm"], 8)
    tn = _tile(N2, CFG["tn"], 128)
    grid = (M // tm, 3, N2 // tn)
    return pl.pallas_call(
        _ln_qkv_kernel,
        out_shape=jax.ShapeDtypeStruct((3, M, N2), jnp.bfloat16),
        grid=grid,
        in_specs=[
            pl.BlockSpec((tm, C), lambda i, s, j: (i, 0)),
            pl.BlockSpec((tm, C), lambda i, s, j: (i, 0)),
            pl.BlockSpec((1, C), lambda i, s, j: (0, 0)),
            pl.BlockSpec((1, C), lambda i, s, j: (0, 0)),
            pl.BlockSpec((1, N2, tn), lambda i, s, j: (s, 0, j)),
            pl.BlockSpec((1, 1, tn), lambda i, s, j: (s, 0, j)),
        ],
        out_specs=pl.BlockSpec((1, tm, tn), lambda i, s, j: (s, i, j)),
        scratch_shapes=[pltpu.VMEM((tm, N2), jnp.bfloat16)],
        compiler_params=pltpu.CompilerParams(
            dimension_semantics=("parallel", "arbitrary", "arbitrary"),
            vmem_limit_bytes=CFG["vmem_limit"]),
    )(xr, xi, g, b, layer["w"], layer["b"])


# ----------------------------------------------------------------------------
# Kernel C: flash-style causal attention, grid (B, T//tq, T//tkv).
# Per head: one dot of depth 2*hd for Re(QK^H), one dot for P@[vr|vi].
# Causal KV blocks are both compute-skipped (pl.when) and DMA-skipped
# (clamped index_map).  Output is the packed (B*T, 2C) layout consumed by proj.
# ----------------------------------------------------------------------------
def _flash_attn_kernel(q_ref, k_ref, v_ref, o_ref, m_sc, l_sc, acc_sc, *,
                       tq, tkv, H, hd):
    qb = pl.program_id(1)
    kb = pl.program_id(2)

    @pl.when(kb == 0)
    def _():
        m_sc[...] = jnp.full_like(m_sc, -jnp.inf)
        l_sc[...] = jnp.zeros_like(l_sc)
        acc_sc[...] = jnp.zeros_like(acc_sc)

    # Skip KV blocks strictly above the causal diagonal.
    @pl.when(kb * tkv <= qb * tq + (tq - 1))
    def _():
        q = q_ref[0]                       # (tq, 2C)  per-head [qr|qi]
        k = k_ref[0]                       # (tkv, 2C) per-head [kr|ki]
        v = v_ref[0]                       # (tkv, 2C) per-head [vr|vi]
        rows = qb * tq + lax.broadcasted_iota(jnp.int32, (tq, tkv), 0)
        cols = kb * tkv + lax.broadcasted_iota(jnp.int32, (tq, tkv), 1)
        causal = rows >= cols
        cdims = (((1,), (1,)), ((), ()))   # contract last dim, no transpose
        for h in range(H):
            lo = 2 * hd * h
            hi = lo + 2 * hd
            # Re(Q K^H) = qr.kr^T + qi.ki^T as ONE dot of depth 2*hd.
            s = lax.dot_general(q[:, lo:hi], k[:, lo:hi], cdims,
                                preferred_element_type=jnp.float32)
            s = jnp.where(causal, s, -1e30)
            m_prev = m_sc[:, h:h + 1]
            m_new = jnp.maximum(m_prev, jnp.max(s, axis=-1, keepdims=True))
            alpha = jnp.exp(m_prev - m_new)
            p = jnp.exp(s - m_new)
            l_sc[:, h:h + 1] = alpha * l_sc[:, h:h + 1] + jnp.sum(
                p, axis=-1, keepdims=True)
            acc_sc[:, lo:hi] = alpha * acc_sc[:, lo:hi] + jnp.dot(
                p.astype(v.dtype), v[:, lo:hi],
                preferred_element_type=jnp.float32)
            m_sc[:, h:h + 1] = m_new

    @pl.when(kb == pl.num_programs(2) - 1)
    def _():
        for h in range(H):
            lo = 2 * hd * h
            hi = lo + 2 * hd
            inv_l = pl.reciprocal(l_sc[:, h:h + 1], approx=False)
            o_ref[:, lo:hi] = (acc_sc[:, lo:hi] * inv_l).astype(o_ref.dtype)


def flash_attention(qkv, *, B, T, H, hd):
    _, M, N2 = qkv.shape
    tq = _tile(T, CFG["tq"], 8)
    tkv = _tile(T, CFG["tkv"], 8)
    nq = T // tq
    nkv = T // tkv

    def kv_row(b, qb, kb):
        # Clamp so causally-skipped blocks re-use the resident K/V tile.
        last_needed = (qb * tq + tq - 1) // tkv
        return b * nkv + jnp.minimum(kb, last_needed)

    q_spec = pl.BlockSpec((1, tq, N2), lambda b, qb, kb: (0, b * nq + qb, 0))
    k_spec = pl.BlockSpec((1, tkv, N2),
                          lambda b, qb, kb: (1, kv_row(b, qb, kb), 0))
    v_spec = pl.BlockSpec((1, tkv, N2),
                          lambda b, qb, kb: (2, kv_row(b, qb, kb), 0))
    o_spec = pl.BlockSpec((tq, N2), lambda b, qb, kb: (b * nq + qb, 0))

    return pl.pallas_call(
        functools.partial(_flash_attn_kernel, tq=tq, tkv=tkv, H=H, hd=hd),
        out_shape=jax.ShapeDtypeStruct((M, N2), jnp.bfloat16),
        grid=(B, nq, nkv),
        in_specs=[q_spec, k_spec, v_spec],
        out_specs=o_spec,
        scratch_shapes=[pltpu.VMEM((tq, H), jnp.float32),
                        pltpu.VMEM((tq, H), jnp.float32),
                        pltpu.VMEM((tq, N2), jnp.float32)],
        compiler_params=pltpu.CompilerParams(
            dimension_semantics=("parallel", "parallel", "arbitrary"),
            vmem_limit_bytes=CFG["vmem_limit"]),
    )(qkv, qkv, qkv)


# ----------------------------------------------------------------------------
# Kernel B: K-tiled packed-activation complex linear with fused residual add.
# Input z is a packed real/imag activation (width Kp); weights are pre-packed
# (Kp, N) so each K tile needs only 2 dots.  f32 accumulators, pl.when
# init/finalize.  Used for attn-proj and fc2.
# ----------------------------------------------------------------------------
def _plinear_residual_kernel(z_ref, wr_ref, wi_ref, br_ref, bi_ref,
                             resr_ref, resi_ref, yr_ref, yi_ref,
                             accr_ref, acci_ref):
    k = pl.program_id(2)

    @pl.when(k == 0)
    def _():
        accr_ref[...] = jnp.zeros_like(accr_ref)
        acci_ref[...] = jnp.zeros_like(acci_ref)

    z = z_ref[...]
    accr_ref[...] += jnp.dot(z, wr_ref[...], preferred_element_type=jnp.float32)
    acci_ref[...] += jnp.dot(z, wi_ref[...], preferred_element_type=jnp.float32)

    @pl.when(k == pl.num_programs(2) - 1)
    def _():
        yr = (accr_ref[...] + br_ref[...].astype(jnp.float32)
              + resr_ref[...].astype(jnp.float32))
        yi = (acci_ref[...] + bi_ref[...].astype(jnp.float32)
              + resi_ref[...].astype(jnp.float32))
        yr_ref[...] = yr.astype(yr_ref.dtype)
        yi_ref[...] = yi.astype(yi_ref.dtype)


def packed_linear_residual(z, layer, resr, resi, *, out_dtype=jnp.bfloat16):
    M, Kp = z.shape
    N = layer["wr"].shape[1]
    tm = _tile(M, CFG["tm"], 8)
    tn = _tile(N, CFG["tn"], 128)
    tk = _tile(Kp, CFG["tk"], 128)
    grid = (M // tm, N // tn, Kp // tk)
    z_spec = pl.BlockSpec((tm, tk), lambda i, j, k: (i, k))
    w_spec = pl.BlockSpec((tk, tn), lambda i, j, k: (k, j))
    b_spec = pl.BlockSpec((1, tn), lambda i, j, k: (0, j))
    res_spec = pl.BlockSpec((tm, tn), lambda i, j, k: (i, j))
    return pl.pallas_call(
        _plinear_residual_kernel,
        out_shape=(jax.ShapeDtypeStruct((M, N), out_dtype),
                   jax.ShapeDtypeStruct((M, N), out_dtype)),
        grid=grid,
        in_specs=[z_spec, w_spec, w_spec, b_spec, b_spec, res_spec, res_spec],
        out_specs=(res_spec, res_spec),
        scratch_shapes=[pltpu.VMEM((tm, tn), jnp.float32),
                        pltpu.VMEM((tm, tn), jnp.float32)],
        compiler_params=pltpu.CompilerParams(
            dimension_semantics=("parallel", "parallel", "arbitrary"),
            vmem_limit_bytes=CFG["vmem_limit"]),
    )(z, layer["wr"], layer["wi"], layer["br"], layer["bi"], resr, resi)


# ----------------------------------------------------------------------------
# Parameter init (deterministic, synthetic).  Weights in bf16, LN params /
# biases in f32.  All packing / head-interleaving / scale folding done here
# (one-time, free).
# ----------------------------------------------------------------------------
def _raw_complex(key, fan_in, fan_out):
    k1, k2 = jax.random.split(key)
    wr = jax.random.normal(k1, (fan_in, fan_out), jnp.float32) * 0.02
    wi = jax.random.normal(k2, (fan_in, fan_out), jnp.float32) * 0.02
    br = jnp.zeros((1, fan_out), jnp.float32)
    bi = jnp.zeros((1, fan_out), jnp.float32)
    return wr, wi, br, bi


def _interleave_heads_out(w_real, w_imag, H, hd):
    # (K, H*hd) x2 -> (K, 2*H*hd) with per-head [real hd | imag hd] columns.
    K = w_real.shape[0]
    return jnp.stack([w_real.reshape(K, H, hd), w_imag.reshape(K, H, hd)],
                     axis=2).reshape(K, 2 * H * hd)


def _pack_qkv_section(wr, wi, br, bi, H, hd, scale=1.0):
    # ComplexLinear(C->C) re-expressed on [LN(xr)|LN(xi)] with per-head packed
    # output columns; optional 1/sqrt(hd) scale folded in.
    w_rp = jnp.concatenate([wr, -wi], axis=0) * scale   # real-producing
    w_ip = jnp.concatenate([wi, wr], axis=0) * scale    # imag-producing
    w = _interleave_heads_out(w_rp, w_ip, H, hd)        # (2C, 2C)
    b = _interleave_heads_out(br * scale, bi * scale, H, hd)   # (1, 2C)
    return w, b


def init_params(key, vocab_size, n_embed, n_head, n_layer):
    C = n_embed
    H = n_head
    hd = C // H
    keys = jax.random.split(key, n_layer + 2)
    params = dict(vocab_size=vocab_size, n_embed=C, n_head=H)

    # AdaptiveEmbedding(cutoffs=[], div_val=1, d_proj==d_embed): plain table;
    # sqrt(C) scale and bf16 storage folded in at init.
    params["emb"] = (jax.random.normal(keys[0], (vocab_size, C), jnp.float32)
                     * 0.02 * (C ** 0.5)).astype(jnp.bfloat16)

    q_scale = 1.0 / (hd ** 0.5)
    blocks = []
    for l in range(n_layer):
        bkeys = jax.random.split(keys[1 + l], 6)
        # --- fused QKV: (3, 2C, 2C) packed weight, per-head [r|i] outputs.
        wq = _pack_qkv_section(*_raw_complex(bkeys[0], C, C), H, hd, q_scale)
        wk = _pack_qkv_section(*_raw_complex(bkeys[1], C, C), H, hd)
        wv = _pack_qkv_section(*_raw_complex(bkeys[2], C, C), H, hd)
        qkv = dict(
            w=jnp.stack([wq[0], wk[0], wv[0]], axis=0).astype(jnp.bfloat16),
            b=jnp.stack([wq[1], wk[1], wv[1]], axis=0))
        # --- proj: rows reordered to consume the per-head packed attn output.
        pr, pi, pbr, pbi = _raw_complex(bkeys[3], C, C)
        pr3 = pr.reshape(H, hd, C)
        pi3 = pi.reshape(H, hd, C)
        proj = dict(
            wr=jnp.concatenate([pr3, -pi3], axis=1).reshape(2 * C, C)
            .astype(jnp.bfloat16),
            wi=jnp.concatenate([pi3, pr3], axis=1).reshape(2 * C, C)
            .astype(jnp.bfloat16),
            br=pbr, bi=pbi)
        # --- fc1: (2C, 8C) packed weight; output is [hr | hi].
        f1r, f1i, f1br, f1bi = _raw_complex(bkeys[4], C, 4 * C)
        fc1 = dict(
            w=jnp.concatenate(
                [jnp.concatenate([f1r, f1i], axis=1),
                 jnp.concatenate([-f1i, f1r], axis=1)], axis=0)
            .astype(jnp.bfloat16),
            b=jnp.concatenate([f1br, f1bi], axis=1))
        # --- fc2: packed (8C, C) weights consuming [hr | hi].
        f2r, f2i, f2br, f2bi = _raw_complex(bkeys[5], 4 * C, C)
        fc2 = dict(
            wr=jnp.concatenate([f2r, -f2i], axis=0).astype(jnp.bfloat16),
            wi=jnp.concatenate([f2i, f2r], axis=0).astype(jnp.bfloat16),
            br=f2br, bi=f2bi)
        blocks.append(dict(
            ln1_g=jnp.ones((1, C), jnp.float32),
            ln1_b=jnp.zeros((1, C), jnp.float32),
            qkv=qkv, proj=proj,
            ln2_g=jnp.ones((1, C), jnp.float32),
            ln2_b=jnp.zeros((1, C), jnp.float32),
            fc1=fc1, fc2=fc2))
    params["blocks"] = blocks
    params["lnf_g"] = jnp.ones((1, C), jnp.float32)
    params["lnf_b"] = jnp.zeros((1, C), jnp.float32)
    # lm_head: only the real logits; vocab padded to a multiple of 128 so the
    # huge matmul stays at full MXU/lane width (pad sliced off in the wrapper).
    Vp = ((vocab_size + 127) // 128) * 128
    hwr, hwi, hbr, _ = _raw_complex(keys[-1], C, vocab_size)
    wcr = jnp.concatenate([hwr, -hwi], axis=0)            # (2C, V)
    wcr = jnp.pad(wcr, ((0, 0), (0, Vp - vocab_size)))
    hbr = jnp.pad(hbr, ((0, 0), (0, Vp - vocab_size)))
    params["head"] = dict(w=wcr.astype(jnp.bfloat16), b=hbr)
    return params


# ----------------------------------------------------------------------------
# Forward
# ----------------------------------------------------------------------------
def cvgpt_forward(params, idx, targets=None):
    B, T = idx.shape
    C = params["n_embed"]
    H = params["n_head"]
    hd = C // H
    V = params["vocab_size"]

    # TODO(synk): embedding gather and the final cross-entropy stay in plain
    # XLA (tiny compared with the blocks; no Pallas gather needed).
    xr = jnp.take(params["emb"], idx.reshape(B * T), axis=0)   # (B*T, C) bf16
    xi = jnp.zeros_like(xr)

    for blk in params["blocks"]:
        # attention sub-layer: fused LN1+QKV -> flash attn -> proj + residual
        qkv = ln_qkv_projection(xr, xi, blk["ln1_g"], blk["ln1_b"],
                                blk["qkv"])                    # (3, B*T, 2C)
        attn = flash_attention(qkv, B=B, T=T, H=H, hd=hd)      # (B*T, 2C)
        xr, xi = packed_linear_residual(attn, blk["proj"], xr, xi)
        # feed-forward sub-layer: fused LN2+fc1+ReLU -> fc2 + residual
        h = ln_linear(xr, xi, blk["ln2_g"], blk["ln2_b"], blk["fc1"],
                      relu=True)                               # (B*T, 8C)
        xr, xi = packed_linear_residual(h, blk["fc2"], xr, xi)

    # final LN fused into the lm_head; only real logits computed.
    logits = ln_linear(xr, xi, params["lnf_g"], params["lnf_b"],
                       params["head"], out_dtype=jnp.float32,
                       tm_target=CFG["tm_head"])               # (B*T, Vpad)
    logits = logits[:, :V].reshape(B, T, V)

    if targets is None:
        loss = None
    else:
        flat_logits = logits.reshape(B * T, V)
        flat_targets = targets.reshape(B * T)
        logp = jax.nn.log_softmax(flat_logits, axis=-1)
        loss = -jnp.mean(jnp.take_along_axis(
            logp, flat_targets[:, None], axis=-1))
    return logits, loss


if __name__ == "__main__":
    vocab_size, n_embed, n_head, n_layer, block_size = 64, 32, 4, 2, 8
    dropout = 0.0  # eval mode -> dropout is identity
    B, T = 2, 8

    key = jax.random.PRNGKey(0)
    kparam, kidx = jax.random.split(key)
    params = init_params(kparam, vocab_size, n_embed, n_head, n_layer)
    idx = jax.random.randint(kidx, (B, T), 0, vocab_size, dtype=jnp.int32)

    logits, loss = cvgpt_forward(params, idx, targets=None)
    jax.block_until_ready(logits)
    assert logits.shape == (B, T, vocab_size)
    assert logits.dtype == jnp.float32
    assert bool(jnp.all(jnp.isfinite(logits)))
    print("KERNEL_OK")
</pallas_src>

<mosaic_0001>
module attributes {stable_mosaic.version = 11 : i64} {
  func.func @_ln_qkv_kernel(%arg0: i32, %arg1: i32, %arg2: i32, %arg3: memref<16x32xbf16, #tpu.memory_space<vmem>>, %arg4: memref<16x32xbf16, #tpu.memory_space<vmem>>, %arg5: memref<1x32xf32, #tpu.memory_space<vmem>>, %arg6: memref<1x32xf32, #tpu.memory_space<vmem>>, %arg7: memref<1x64x64xbf16, #tpu.memory_space<vmem>>, %arg8: memref<1x1x64xf32, #tpu.memory_space<vmem>>, %arg9: memref<1x16x64xbf16, #tpu.memory_space<vmem>>, %arg10: memref<16x64xbf16, #tpu.memory_space<vmem>>) attributes {dimension_semantics = [#tpu.dimension_semantics<parallel>, #tpu.dimension_semantics<arbitrary>, #tpu.dimension_semantics<arbitrary>], iteration_bounds = array<i64: 1, 3, 1>, scalar_prefetch = 0 : i64, scratch_operands = 1 : i64, tpu.core_type = #tpu.core_type<tc>, window_params = [{transform_indices = @transform_0, window_bounds = array<i64: 16, 32>}, {transform_indices = @transform_1, window_bounds = array<i64: 16, 32>}, {pipeline_mode = #tpu.pipeline_mode<synchronous>, transform_indices = @transform_2, window_bounds = array<i64: 1, 32>}, {pipeline_mode = #tpu.pipeline_mode<synchronous>, transform_indices = @transform_3, window_bounds = array<i64: 1, 32>}, {transform_indices = @transform_4, window_bounds = array<i64: 1, 64, 64>}, {transform_indices = @transform_5, window_bounds = array<i64: 1, 1, 64>}, {transform_indices = @transform_6, window_bounds = array<i64: 1, 16, 64>}]} {
    %c0_i32 = arith.constant 0 : i32
    %0 = arith.cmpi eq, %arg1, %c0_i32 : i32
    %c0_i32_0 = arith.constant 0 : i32
    %1 = arith.cmpi eq, %arg2, %c0_i32_0 : i32
    %2 = arith.andi %0, %1 : i1
    %3 = arith.extui %2 : i1 to i32
    %c0_i32_1 = arith.constant 0 : i32
    %4 = arith.cmpi ne, %3, %c0_i32_1 : i32
    scf.if %4 {
      %c0_12 = arith.constant 0 : index
      %c0_13 = arith.constant 0 : index
      %17 = vector.load %arg5[%c0_12, %c0_13] : memref<1x32xf32, #tpu.memory_space<vmem>>, vector<1x32xf32>
      %c0_14 = arith.constant 0 : index
      %c0_15 = arith.constant 0 : index
      %18 = vector.load %arg6[%c0_14, %c0_15] : memref<1x32xf32, #tpu.memory_space<vmem>>, vector<1x32xf32>
      %c0_16 = arith.constant 0 : index
      %c0_17 = arith.constant 0 : index
      %19 = vector.load %arg3[%c0_16, %c0_17] : memref<16x32xbf16, #tpu.memory_space<vmem>>, vector<16x32xbf16>
      %20 = arith.extf %19 : vector<16x32xbf16> to vector<16x32xf32>
      %cst_18 = arith.constant dense<0.000000e+00> : vector<16xf32>
      %21 = vector.multi_reduction <add>, %20, %cst_18 [1] : vector<16x32xf32> to vector<16xf32>
      %22 = vector.shape_cast %21 : vector<16xf32> to vector<16x1xf32>
      %cst_19 = arith.constant 3.200000e+01 : f32
      %23 = vector.broadcast %cst_19 : f32 to vector<16x1xf32>
      %24 = arith.divf %22, %23 : vector<16x1xf32>
      %25 = vector.broadcast %24 : vector<16x1xf32> to vector<16x32xf32>
      %26 = arith.subf %20, %25 : vector<16x32xf32>
      %27 = arith.mulf %26, %26 : vector<16x32xf32>
      %cst_20 = arith.constant dense<0.000000e+00> : vector<16xf32>
      %28 = vector.multi_reduction <add>, %27, %cst_20 [1] : vector<16x32xf32> to vector<16xf32>
      %29 = vector.shape_cast %28 : vector<16xf32> to vector<16x1xf32>
      %cst_21 = arith.constant 3.200000e+01 : f32
      %30 = vector.broadcast %cst_21 : f32 to vector<16x1xf32>
      %31 = arith.divf %29, %30 : vector<16x1xf32>
      %32 = vector.broadcast %24 : vector<16x1xf32> to vector<16x32xf32>
      %33 = arith.subf %20, %32 : vector<16x32xf32>
      %cst_22 = arith.constant 9.99999974E-6 : f32
      %34 = vector.broadcast %cst_22 : f32 to vector<16x1xf32>
      %35 = arith.addf %31, %34 : vector<16x1xf32>
      %36 = math.rsqrt %35 : vector<16x1xf32>
      %37 = vector.broadcast %36 : vector<16x1xf32> to vector<16x32xf32>
      %38 = arith.mulf %33, %37 : vector<16x32xf32>
      %39 = vector.broadcast %17 : vector<1x32xf32> to vector<16x32xf32>
      %40 = arith.mulf %38, %39 : vector<16x32xf32>
      %41 = vector.broadcast %18 : vector<1x32xf32> to vector<16x32xf32>
      %42 = arith.addf %40, %41 : vector<16x32xf32>
      %43 = arith.truncf %42 : vector<16x32xf32> to vector<16x32xbf16>
      %c0_23 = arith.constant 0 : index
      %c0_24 = arith.constant 0 : index
      %44 = vector.load %arg10[%c0_23, %c0_24] : memref<16x64xbf16, #tpu.memory_space<vmem>>, vector<16x32xbf16>
      tpu.vector_store %arg10[%c0_23, %c0_24], %43 {strides = array<i32>} : memref<16x64xbf16, #tpu.memory_space<vmem>>, vector<16x32xbf16>,
      %c0_25 = arith.constant 0 : index
      %c0_26 = arith.constant 0 : index
      %45 = vector.load %arg4[%c0_25, %c0_26] : memref<16x32xbf16, #tpu.memory_space<vmem>>, vector<16x32xbf16>
      %46 = arith.extf %45 : vector<16x32xbf16> to vector<16x32xf32>
      %cst_27 = arith.constant dense<0.000000e+00> : vector<16xf32>
      %47 = vector.multi_reduction <add>, %46, %cst_27 [1] : vector<16x32xf32> to vector<16xf32>
      %48 = vector.shape_cast %47 : vector<16xf32> to vector<16x1xf32>
      %cst_28 = arith.constant 3.200000e+01 : f32
      %49 = vector.broadcast %cst_28 : f32 to vector<16x1xf32>
      %50 = arith.divf %48, %49 : vector<16x1xf32>
      %51 = vector.broadcast %50 : vector<16x1xf32> to vector<16x32xf32>
      %52 = arith.subf %46, %51 : vector<16x32xf32>
      %53 = arith.mulf %52, %52 : vector<16x32xf32>
      %cst_29 = arith.constant dense<0.000000e+00> : vector<16xf32>
      %54 = vector.multi_reduction <add>, %53, %cst_29 [1] : vector<16x32xf32> to vector<16xf32>
      %55 = vector.shape_cast %54 : vector<16xf32> to vector<16x1xf32>
      %cst_30 = arith.constant 3.200000e+01 : f32
      %56 = vector.broadcast %cst_30 : f32 to vector<16x1xf32>
      %57 = arith.divf %55, %56 : vector<16x1xf32>
      %58 = vector.broadcast %50 : vector<16x1xf32> to vector<16x32xf32>
      %59 = arith.subf %46, %58 : vector<16x32xf32>
      %cst_31 = arith.constant 9.99999974E-6 : f32
      %60 = vector.broadcast %cst_31 : f32 to vector<16x1xf32>
      %61 = arith.addf %57, %60 : vector<16x1xf32>
      %62 = math.rsqrt %61 : vector<16x1xf32>
      %63 = vector.broadcast %62 : vector<16x1xf32> to vector<16x32xf32>
      %64 = arith.mulf %59, %63 : vector<16x32xf32>
      %65 = vector.broadcast %17 : vector<1x32xf32> to vector<16x32xf32>
      %66 = arith.mulf %64, %65 : vector<16x32xf32>
      %67 = vector.broadcast %18 : vector<1x32xf32> to vector<16x32xf32>
      %68 = arith.addf %66, %67 : vector<16x32xf32>
      %69 = arith.truncf %68 : vector<16x32xf32> to vector<16x32xbf16>
      %c0_32 = arith.constant 0 : index
      %c32 = arith.constant 32 : index
      %70 = vector.load %arg10[%c0_32, %c32] : memref<16x64xbf16, #tpu.memory_space<vmem>>, vector<16x32xbf16>
      tpu.vector_store %arg10[%c0_32, %c32], %69 {strides = array<i32>} : memref<16x64xbf16, #tpu.memory_space<vmem>>, vector<16x32xbf16>,
    } else {
    }
    %c0 = arith.constant 0 : index
    %c0_2 = arith.constant 0 : index
    %5 = vector.load %arg10[%c0, %c0_2] : memref<16x64xbf16, #tpu.memory_space<vmem>>, vector<16x64xbf16>
    %c0_3 = arith.constant 0 : index
    %c0_4 = arith.constant 0 : index
    %c0_5 = arith.constant 0 : index
    %6 = vector.load %arg7[%c0_3, %c0_4, %c0_5] : memref<1x64x64xbf16, #tpu.memory_space<vmem>>, vector<1x64x64xbf16>
    %7 = vector.shape_cast %6 : vector<1x64x64xbf16> to vector<64x64xbf16>
    %cst = arith.constant dense<0.000000e+00> : vector<16x64xf32>
    %8 = tpu.matmul %5, %7, %cst {dimension_numbers = #tpu.dot_dimension_numbers<[1], [0], [0], [1], [0, 0, 1, 1], [], []>} : vector<16x64xbf16>, vector<64x64xbf16>, vector<16x64xf32> -> vector<16x64xf32>
    %c0_6 = arith.constant 0 : index
    %c0_7 = arith.constant 0 : index
    %c0_8 = arith.constant 0 : index
    %9 = vector.load %arg8[%c0_6, %c0_7, %c0_8] : memref<1x1x64xf32, #tpu.memory_space<vmem>>, vector<1x1x64xf32>
    %10 = vector.shape_cast %9 : vector<1x1x64xf32> to vector<1x64xf32>
    %11 = vector.broadcast %10 : vector<1x64xf32> to vector<16x64xf32>
    %12 = arith.addf %8, %11 : vector<16x64xf32>
    %13 = arith.truncf %12 : vector<16x64xf32> to vector<16x64xbf16>
    %c0_9 = arith.constant 0 : index
    %c0_10 = arith.constant 0 : index
    %c0_11 = arith.constant 0 : index
    %14 = vector.load %arg9[%c0_9, %c0_10, %c0_11] : memref<1x16x64xbf16, #tpu.memory_space<vmem>>, vector<1x16x64xbf16>
    %15 = vector.shape_cast %14 : vector<1x16x64xbf16> to vector<16x64xbf16>
    %16 = vector.shape_cast %13 : vector<16x64xbf16> to vector<1x16x64xbf16>
    tpu.vector_store %arg9[%c0_9, %c0_10, %c0_11], %16 {strides = array<i32>} : memref<1x16x64xbf16, #tpu.memory_space<vmem>>, vector<1x16x64xbf16>,
    return
  }
  func.func @transform_0(%arg0: i32, %arg1: i32, %arg2: i32) -> (i32, i32) {
    %c0_i32 = arith.constant 0 : i32
    %c0_i32_0 = arith.constant 0 : i32
    return %arg0, %c0_i32 : i32, i32
  }
  func.func @transform_1(%arg0: i32, %arg1: i32, %arg2: i32) -> (i32, i32) {
    %c0_i32 = arith.constant 0 : i32
    %c0_i32_0 = arith.constant 0 : i32
    return %arg0, %c0_i32 : i32, i32
  }
  func.func @transform_2(%arg0: i32, %arg1: i32, %arg2: i32) -> (i32, i32) {
    %c0_i32 = arith.constant 0 : i32
    %c0_i32_0 = arith.constant 0 : i32
    %c0_i32_1 = arith.constant 0 : i32
    return %c0_i32, %c0_i32_0 : i32, i32
  }
  func.func @transform_3(%arg0: i32, %arg1: i32, %arg2: i32) -> (i32, i32) {
    %c0_i32 = arith.constant 0 : i32
    %c0_i32_0 = arith.constant 0 : i32
    %c0_i32_1 = arith.constant 0 : i32
    return %c0_i32, %c0_i32_0 : i32, i32
  }
  func.func @transform_4(%arg0: i32, %arg1: i32, %arg2: i32) -> (i32, i32, i32) {
    %c0_i32 = arith.constant 0 : i32
    %c0_i32_0 = arith.constant 0 : i32
    return %arg1, %c0_i32, %arg2 : i32, i32, i32
  }
  func.func @transform_5(%arg0: i32, %arg1: i32, %arg2: i32) -> (i32, i32, i32) {
    %c0_i32 = arith.constant 0 : i32
    %c0_i32_0 = arith.constant 0 : i32
    return %arg1, %c0_i32, %arg2 : i32, i32, i32
  }
  func.func @transform_6(%arg0: i32, %arg1: i32, %arg2: i32) -> (i32, i32, i32) {
    %c0_i32 = arith.constant 0 : i32
    return %arg1, %arg0, %arg2 : i32, i32, i32
  }
}

</mosaic_0001>

<llo_original>
// kernel: tpu_custom_call.1
$region0: #{tpu_custom_call.1}
  #allocation0 [shape = 'u32[]', space=smem, size = 0x4, offset = 0x4, fixed_abs, tag = 'smem constant byte address 0x4 - core index']
  #allocation1 [shape = 'u32[144,128]{1,0:T(1,128)}', space=vmem, size = 0x12000, scoped, tag = 'internal scratch']
  #allocation2 [shape = 'bf16[16,64]{1,0:T(16,128)(2,1)}', space=vmem, size = 0x1000, scoped, tag = 'scratch operand']
  %s0 = inlined_call_operand.hbm [shape: bf16[16,32], index: 0, kind: input, shape index: {}]
  %s1 = inlined_call_operand.hbm [shape: bf16[16,32], index: 1, kind: input, shape index: {}]
  %s2 = inlined_call_operand.hbm [shape: f32[1,32], index: 2, kind: input, shape index: {}]
  %s3 = inlined_call_operand.hbm [shape: f32[1,32], index: 3, kind: input, shape index: {}]
  %s4 = inlined_call_operand.hbm [shape: bf16[3,64,64], index: 4, kind: input, shape index: {}]
  %s5 = inlined_call_operand.hbm [shape: f32[3,1,64], index: 5, kind: input, shape index: {}]
  %s6 = inlined_call_operand.hbm [shape: bf16[3,16,64], index: 6, kind: output, shape index: {}]
  %s7 = sld [smem:[#allocation0]]
  $region85: #{tpu_custom_call.1} parent=0
    _
  %s9 = ssub.s32 1, %s7
  %s10 = scalar_select 0, %s9, %s7
  $region1: #{tpu_custom_call.1} parent=0
    #allocation3 [shape = 'u8[4096]{0}', space=vmem, size = 0x1000, scoped, tag = 'input window, operand 0, single buffered']
    #allocation4 [shape = 's32[2]{0}', space=sflag, size = 0x8, scoped, tag = 'scoped memory for tpu_custom_call.1']
    #allocation5 [shape = 's32[2]{0}', space=sflag, size = 0x8, scoped, tag = 'scoped memory for tpu_custom_call.1']
    #allocation6 [shape = 'u8[4096]{0}', space=vmem, size = 0x1000, scoped, tag = 'input window, operand 1, single buffered']
    #allocation7 [shape = 's32[1]{0}', space=sflag, size = 0x4, scoped, tag = 'scoped memory for tpu_custom_call.1']
    #allocation8 [shape = 'u8[512]{0}', space=vmem, size = 0x400, scoped, tag = 'input window, operand 2, single buffered']
    #allocation9 [shape = 'u8[512]{0}', space=vmem, size = 0x400, scoped, tag = 'input window, operand 3, single buffered']
    #allocation10 [shape = 's32[1]{0}', space=sflag, size = 0x4, scoped, tag = 'scoped memory for tpu_custom_call.1']
    #allocation11 [shape = 'u8[32768]{0}', space=vmem, size = 0x8000, scoped, tag = 'input window, operand 4']
    #allocation12 [shape = 'u8[1024]{0}', space=vmem, size = 0x400, scoped, tag = 'input window, operand 5']
    #allocation13 [shape = 'u8[8192]{0}', space=vmem, size = 0x2000, scoped, tag = 'output window, operand 0']
    %11 = vsyncpa [#allocation4], 0
    %12 = vsyncpa [#allocation7], 0
    %13 = vsyncpa [#allocation10], 0
    %14 = vsyncpa [#allocation5], 0
    %s15 = scalar_lea.sflag [#allocation5], 1
    %16 = vsyncpa %s15, 0
    loop: start=0, step=1, limit=5
    $region2: #{tpu_custom_call.1} parent=1 // loop_pre_header
      _
    $region3: #{tpu_custom_call.1} parent=1 // loop_header
      %s18 = sphi 0, %s22
      %p19 = scmp.ge.s32.totalorder %s18, 5
      %s25 = sphi 0, %s44
      %s26 = sphi 0, %s40
      %s27 = sphi 0, %s36
      %s28 = sphi 0, %s25
      %s29 = sphi 0, %s26
      %s30 = sphi 0, %s27
      %s31 = sphi 0, %s28
      %s32 = sphi 0, %s29
      %s33 = sphi 0, %s30
      %s47 = sphi 0, %s49
      %s50 = sphi 0, %s47
      %s51 = sphi 0, %s50
      %s67 = sphi 0, %s51
      %s73 = sphi 0, %s75
      %s76 = sphi 0, %s73
      %s77 = sphi 0, %s76
      %s93 = sphi 0, %s77
      %s97 = sphi 0, %s97
      %s99 = sphi 0, %s97
      %s100 = sphi 0, %s99
      %s114 = sphi 0, %s100
      %s118 = sphi 0, %s118
      %s120 = sphi 0, %s118
      %s121 = sphi 0, %s120
      %s135 = sphi 0, %s121
      %s143 = sphi 0, %s145
      %s146 = sphi 0, %s143
      %s147 = sphi 0, %s146
      %s163 = sphi 0, %s147
      %s171 = sphi 0, %s173
      %s174 = sphi 0, %s171
      %s175 = sphi 0, %s174
      %s191 = sphi 0, %s175
      %s201 = sphi 0, %s203
      %s204 = sphi 0, %s201
      %s205 = sphi 0, %s204
      %s221 = sphi 0, %s205
    $region4: #{tpu_custom_call.1} parent=1 // loop_header_branch
      %21 = sbr.rel (%p19) target = $region8
    $region5: #{tpu_custom_call.1} parent=1 // loop_body
      %s23 = ssub.s32 %s18, 1
      %s24 = ssub.s32 %s18, 2
      %s34 = sadd.s32 1, %s27
      %p35 = scmp.ge.s32.totalorder %s34, 1
      %s36 = scalar_select %p35, 0, %s34
      %s37 = sadd.s32 1, %s26
      %s38 = scalar_select %p35, %s37, %s26
      %p39 = scmp.ge.s32.totalorder %s38, 3
      %s40 = scalar_select %p39, 0, %s38
      %s41 = sadd.s32 1, %s25
      %s42 = scalar_select %p39, %s41, %s25
      %p43 = scmp.ge.s32.totalorder %s42, 1
      %s44 = scalar_select %p43, 0, %s42
      %s45 = ssub.s32 %s25, %s44
      %p46 = scmp.eq.s32.totalorder %s45, 0
      %s48 = sadd.s32 %s47, 1
      %s49 = scalar_select %p46, %s47, %s48
      %p52 = pneg %p46
      %p53 = scmp.eq.s32.totalorder %s18, 2
      %p54 = por %p52, %p53
      %p55 = scmp.ne.s32.totalorder %s47, %s50
      %p56 = scmp.eq.s32.totalorder %s18, 0
      %p57 = por %p55, %p56
      %p58 = scmp.ne.s32.totalorder %s47, %s50
      %p59 = scmp.eq.s32.totalorder %s23, 2
      %p60 = por %p58, %p59
      %p61 = scmp.ne.s32.totalorder %s50, %s51
      %p62 = scmp.eq.s32.totalorder %s23, 0
      %p63 = por %p61, %p62
      %p64 = scmp.ne.s32.totalorder %s50, %s51
      %p65 = scmp.eq.s32.totalorder %s24, 2
      %p66 = por %p64, %p65
      %p68 = scmp.ne.s32.totalorder %s51, %s67
      %p69 = scmp.eq.s32.totalorder %s24, 0
      %p70 = por %p68, %p69
      %s71 = ssub.s32 %s25, %s44
      %p72 = scmp.eq.s32.totalorder %s71, 0
      %s74 = sadd.s32 %s73, 1
      %s75 = scalar_select %p72, %s73, %s74
      %p78 = pneg %p72
      %p79 = scmp.eq.s32.totalorder %s18, 2
      %p80 = por %p78, %p79
      %p81 = scmp.ne.s32.totalorder %s73, %s76
      %p82 = scmp.eq.s32.totalorder %s18, 0
      %p83 = por %p81, %p82
      %p84 = scmp.ne.s32.totalorder %s73, %s76
      %p85 = scmp.eq.s32.totalorder %s23, 2
      %p86 = por %p84, %p85
      %p87 = scmp.ne.s32.totalorder %s76, %s77
      %p88 = scmp.eq.s32.totalorder %s23, 0
      %p89 = por %p87, %p88
      %p90 = scmp.ne.s32.totalorder %s76, %s77
      %p91 = scmp.eq.s32.totalorder %s24, 2
      %p92 = por %p90, %p91
      %p94 = scmp.ne.s32.totalorder %s77, %s93
      %p95 = scmp.eq.s32.totalorder %s24, 0
      %p96 = por %p94, %p95
      %s98 = sadd.s32 %s97, 1
      %p101 = scmp.eq.s32.totalorder %s18, 2
      %p102 = scmp.ne.s32.totalorder %s97, %s99
      %p103 = scmp.eq.s32.totalorder %s18, 0
      %p104 = por %p102, %p103
      %p105 = scmp.ne.s32.totalorder %s97, %s99
      %p106 = scmp.eq.s32.totalorder %s23, 2
      %p107 = por %p105, %p106
      %p108 = scmp.ne.s32.totalorder %s99, %s100
      %p109 = scmp.eq.s32.totalorder %s23, 0
      %p110 = por %p108, %p109
      %p111 = scmp.ne.s32.totalorder %s99, %s100
      %p112 = scmp.eq.s32.totalorder %s24, 2
      %p113 = por %p111, %p112
      %p115 = scmp.ne.s32.totalorder %s100, %s114
      %p116 = scmp.eq.s32.totalorder %s24, 0
      %p117 = por %p115, %p116
      %s119 = sadd.s32 %s118, 1
      %p122 = scmp.eq.s32.totalorder %s18, 2
      %p123 = scmp.ne.s32.totalorder %s118, %s120
      %p124 = scmp.eq.s32.totalorder %s18, 0
      %p125 = por %p123, %p124
      %p126 = scmp.ne.s32.totalorder %s118, %s120
      %p127 = scmp.eq.s32.totalorder %s23, 2
      %p128 = por %p126, %p127
      %p129 = scmp.ne.s32.totalorder %s120, %s121
      %p130 = scmp.eq.s32.totalorder %s23, 0
      %p131 = por %p129, %p130
      %p132 = scmp.ne.s32.totalorder %s120, %s121
      %p133 = scmp.eq.s32.totalorder %s24, 2
      %p134 = por %p132, %p133
      %p136 = scmp.ne.s32.totalorder %s121, %s135
      %p137 = scmp.eq.s32.totalorder %s24, 0
      %p138 = por %p136, %p137
      %s139 = ssub.s32 %s26, %s40
      %s140 = ssub.s32 %s27, %s36
      %s141 = sor.u32 %s139, %s140
      %p142 = scmp.eq.s32.totalorder %s141, 0
      %s144 = sadd.s32 %s143, 1
      %s145 = scalar_select %p142, %s143, %s144
      %p148 = pneg %p142
      %p149 = scmp.eq.s32.totalorder %s18, 2
      %p150 = por %p148, %p149
      %p151 = scmp.ne.s32.totalorder %s143, %s146
      %p152 = scmp.eq.s32.totalorder %s18, 0
      %p153 = por %p151, %p152
      %p154 = scmp.ne.s32.totalorder %s143, %s146
      %p155 = scmp.eq.s32.totalorder %s23, 2
      %p156 = por %p154, %p155
      %p157 = scmp.ne.s32.totalorder %s146, %s147
      %p158 = scmp.eq.s32.totalorder %s23, 0
      %p159 = por %p157, %p158
      %p160 = scmp.ne.s32.totalorder %s146, %s147
      %p161 = scmp.eq.s32.totalorder %s24, 2
      %p162 = por %p160, %p161
      %p164 = scmp.ne.s32.totalorder %s147, %s163
      %p165 = scmp.eq.s32.totalorder %s24, 0
      %p166 = por %p164, %p165
      %s167 = ssub.s32 %s26, %s40
      %s168 = ssub.s32 %s27, %s36
      %s169 = sor.u32 %s167, %s168
      %p170 = scmp.eq.s32.totalorder %s169, 0
      %s172 = sadd.s32 %s171, 1
      %s173 = scalar_select %p170, %s171, %s172
      %p176 = pneg %p170
      %p177 = scmp.eq.s32.totalorder %s18, 2
      %p178 = por %p176, %p177
      %p179 = scmp.ne.s32.totalorder %s171, %s174
      %p180 = scmp.eq.s32.totalorder %s18, 0
      %p181 = por %p179, %p180
      %p182 = scmp.ne.s32.totalorder %s171, %s174
      %p183 = scmp.eq.s32.totalorder %s23, 2
      %p184 = por %p182, %p183
      %p185 = scmp.ne.s32.totalorder %s174, %s175
      %p186 = scmp.eq.s32.totalorder %s23, 0
      %p187 = por %p185, %p186
      %p188 = scmp.ne.s32.totalorder %s174, %s175
      %p189 = scmp.eq.s32.totalorder %s24, 2
      %p190 = por %p188, %p189
      %p192 = scmp.ne.s32.totalorder %s175, %s191
      %p193 = scmp.eq.s32.totalorder %s24, 0
      %p194 = por %p192, %p193
      %s195 = ssub.s32 %s26, %s40
      %s196 = ssub.s32 %s25, %s44
      %s197 = sor.u32 %s195, %s196
      %s198 = ssub.s32 %s27, %s36
      %s199 = sor.u32 %s197, %s198
      %p200 = scmp.eq.s32.totalorder %s199, 0
      %s202 = sadd.s32 %s201, 1
      %s203 = scalar_select %p200, %s201, %s202
      %p206 = pneg %p200
      %p207 = scmp.eq.s32.totalorder %s18, 2
      %p208 = por %p206, %p207
      %p209 = scmp.ne.s32.totalorder %s201, %s204
      %p210 = scmp.eq.s32.totalorder %s18, 0
      %p211 = por %p209, %p210
      %p212 = scmp.ne.s32.totalorder %s201, %s204
      %p213 = scmp.eq.s32.totalorder %s23, 2
      %p214 = por %p212, %p213
      %p215 = scmp.ne.s32.totalorder %s204, %s205
      %p216 = scmp.eq.s32.totalorder %s23, 0
      %p217 = por %p215, %p216
      %p218 = scmp.ne.s32.totalorder %s204, %s205
      %p219 = scmp.eq.s32.totalorder %s24, 2
      %p220 = por %p218, %p219
      %p222 = scmp.ne.s32.totalorder %s205, %s221
      %p223 = scmp.eq.s32.totalorder %s24, 0
      %p224 = por %p222, %p223
      %p225 = scmp.le.s32.totalorder 1, %s18
      %p226 = scmp.lt.s32.totalorder %s18, 4
      %p227 = pnand %p225, %p226
      %p228 = pneg %p227
      // Predicated region
      $region9: #{tpu_custom_call.1} parent=5 // pred_check
        _
      $region10: #{tpu_custom_call.1} parent=5 // pred_check_branch
        %230 = sbr.rel (%p227) target = $region12
      $region11: #{tpu_custom_call.1} parent=5 // pred_region
        %s231 = ssub.s32 %s18, 1
        // Predicated region
        $region13: #{tpu_custom_call.1} parent=11 // pred_check
          %p232 = pneg %p63
        $region14: #{tpu_custom_call.1} parent=11 // pred_check_branch
          %234 = sbr.rel (%p232) target = $region16
        $region15: #{tpu_custom_call.1} parent=11 // pred_region
          %s235 = smul.u32 2, %s28
          %s237 = ssub.s32 128, 128
          %238 = vsyncadd [#allocation4], %s237
          %s239 = smul.addr %s235, 64
          %s240 = scalar_lea.hbm %s0, %s239
          %s241 = sshll.u32 [#allocation3], 4
          %s242 = int_to_ptr.vmem [resolvable:$true] %s241
          %247 = dma.hbm_to_vmem [thread:$0]  %s240, 128, %s242, [#allocation4], 64, 64, 4
        $region16: #{tpu_custom_call.1} parent=11 // pred_fallthru
          _
        // Predicated region
        $region17: #{tpu_custom_call.1} parent=11 // pred_check
          %p248 = pneg %p89
        $region18: #{tpu_custom_call.1} parent=11 // pred_check_branch
          %250 = sbr.rel (%p248) target = $region20
        $region19: #{tpu_custom_call.1} parent=11 // pred_region
          %s251 = smul.u32 2, %s28
          %s253 = ssub.s32 128, 128
          %254 = vsyncadd [#allocation7], %s253
          %s255 = smul.addr %s251, 64
          %s256 = scalar_lea.hbm %s1, %s255
          %s257 = sshll.u32 [#allocation6], 4
          %s258 = int_to_ptr.vmem [resolvable:$true] %s257
          %263 = dma.hbm_to_vmem [thread:$0]  %s256, 128, %s258, [#allocation7], 64, 64, 4
        $region20: #{tpu_custom_call.1} parent=11 // pred_fallthru
          _
        // Predicated region
        $region21: #{tpu_custom_call.1} parent=11 // pred_check
          %p264 = pneg %p110
        $region22: #{tpu_custom_call.1} parent=11 // pred_check_branch
          %266 = sbr.rel (%p264) target = $region24
        $region23: #{tpu_custom_call.1} parent=11 // pred_region
          %s268 = ssub.s32 16, 16
          %269 = vsyncadd [#allocation7], %s268
          %s271 = sshll.u32 [#allocation8], 4
          %s272 = int_to_ptr.vmem [resolvable:$true] %s271
          %274 = dma.hbm_to_vmem [thread:$0]  %s2, 16, %s272, [#allocation7]
        $region24: #{tpu_custom_call.1} parent=11 // pred_fallthru
          _
        // Predicated region
        $region25: #{tpu_custom_call.1} parent=11 // pred_check
          %p275 = pneg %p131
        $region26: #{tpu_custom_call.1} parent=11 // pred_check_branch
          %277 = sbr.rel (%p275) target = $region28
        $region27: #{tpu_custom_call.1} parent=11 // pred_region
          %s279 = ssub.s32 16, 16
          %280 = vsyncadd [#allocation10], %s279
          %s282 = sshll.u32 [#allocation9], 4
          %s283 = int_to_ptr.vmem [resolvable:$true] %s282
          %285 = dma.hbm_to_vmem [thread:$0]  %s3, 16, %s283, [#allocation10]
        $region28: #{tpu_custom_call.1} parent=11 // pred_fallthru
          _
      $region12: #{tpu_custom_call.1} parent=5 // pred_fallthru
        _
      %p286 = scmp.lt.s32.totalorder %s18, 3
      // Predicated region
      $region29: #{tpu_custom_call.1} parent=5 // pred_check
        %p287 = pneg %p286
      $region30: #{tpu_custom_call.1} parent=5 // pred_check_branch
        %289 = sbr.rel (%p287) target = $region32
      $region31: #{tpu_custom_call.1} parent=5 // pred_region
        // Predicated region
        $region33: #{tpu_custom_call.1} parent=31 // pred_check
          %p290 = pneg %p153
        $region34: #{tpu_custom_call.1} parent=31 // pred_check_branch
          %292 = sbr.rel (%p290) target = $region36
        $region35: #{tpu_custom_call.1} parent=31 // pred_region
          %s293 = sand.u32 %s18, 1
          %s294 = scalar_lea.sflag [#allocation4], %s293
          %s295 = sand.u32 %s143, 1
          %s296 = smul.addr %s295, 32
          %s297 = scalar_lea.vmem [#allocation11], %s296
          %s299 = ssub.s32 512, 512
          %300 = vsyncadd %s294, %s299
          %s301 = smul.addr %s26, 8
          %s302 = sadd.s32 %s27, %s301
          %s303 = smul.addr %s302, 64
          %s304 = scalar_lea.hbm %s4, %s303
          %s305 = sshll.u32 %s297, 4
          %s306 = int_to_ptr.vmem [resolvable:$true] %s305
          %311 = dma.hbm_to_vmem [thread:$0]  %s304, 512, %s306, %s294, 64, 64, 4
        $region36: #{tpu_custom_call.1} parent=31 // pred_fallthru
          _
        // Predicated region
        $region37: #{tpu_custom_call.1} parent=31 // pred_check
          %p312 = pneg %p181
        $region38: #{tpu_custom_call.1} parent=31 // pred_check_branch
          %314 = sbr.rel (%p312) target = $region40
        $region39: #{tpu_custom_call.1} parent=31 // pred_region
          %s315 = sand.u32 %s18, 1
          %s316 = scalar_lea.sflag [#allocation4], %s315
          %s317 = sand.u32 %s171, 1
          %s318 = scalar_lea.vmem [#allocation12], %s317
          %s320 = ssub.s32 16, 16
          %321 = vsyncadd %s316, %s320
          %s322 = sadd.s32 %s27, %s26
          %s323 = smul.addr %s322, 16
          %s324 = scalar_lea.hbm %s5, %s323
          %s326 = sshll.u32 %s318, 4
          %s327 = int_to_ptr.vmem [resolvable:$true] %s326
          %329 = dma.hbm_to_vmem [thread:$0]  %s324, 16, %s327, %s316
        $region40: #{tpu_custom_call.1} parent=31 // pred_fallthru
          _
      $region32: #{tpu_custom_call.1} parent=5 // pred_fallthru
        _
      %p330 = scmp.le.s32.totalorder 1, %s18
      %p331 = scmp.lt.s32.totalorder %s18, 4
      %p332 = pnand %p330, %p331
      %p333 = pneg %p332
      // Predicated region
      $region41: #{tpu_custom_call.1} parent=5 // pred_check
        _
      $region42: #{tpu_custom_call.1} parent=5 // pred_check_branch
        %335 = sbr.rel (%p332) target = $region44
      $region43: #{tpu_custom_call.1} parent=5 // pred_region
        %s336 = ssub.s32 %s18, 1
        // Predicated region
        $region45: #{tpu_custom_call.1} parent=43 // pred_check
          %p337 = pneg %p63
        $region46: #{tpu_custom_call.1} parent=43 // pred_check_branch
          %339 = sbr.rel (%p337) target = $region48
        $region47: #{tpu_custom_call.1} parent=43 // pred_region
          %340 = dma.done [#allocation4], 128
        $region48: #{tpu_custom_call.1} parent=43 // pred_fallthru
          _
        // Predicated region
        $region49: #{tpu_custom_call.1} parent=43 // pred_check
          %p341 = pneg %p89
        $region50: #{tpu_custom_call.1} parent=43 // pred_check_branch
          %343 = sbr.rel (%p341) target = $region52
        $region51: #{tpu_custom_call.1} parent=43 // pred_region
          %344 = dma.done [#allocation7], 128
        $region52: #{tpu_custom_call.1} parent=43 // pred_fallthru
          _
        // Predicated region
        $region53: #{tpu_custom_call.1} parent=43 // pred_check
          %p345 = pneg %p110
        $region54: #{tpu_custom_call.1} parent=43 // pred_check_branch
          %347 = sbr.rel (%p345) target = $region56
        $region55: #{tpu_custom_call.1} parent=43 // pred_region
          %348 = dma.done [#allocation7], 16
        $region56: #{tpu_custom_call.1} parent=43 // pred_fallthru
          _
        // Predicated region
        $region57: #{tpu_custom_call.1} parent=43 // pred_check
          %p349 = pneg %p131
        $region58: #{tpu_custom_call.1} parent=43 // pred_check_branch
          %351 = sbr.rel (%p349) target = $region60
        $region59: #{tpu_custom_call.1} parent=43 // pred_region
          %352 = dma.done [#allocation10], 16
        $region60: #{tpu_custom_call.1} parent=43 // pred_fallthru
          _
        %s353 = sand.u32 %s23, 1
        %s354 = scalar_lea.sflag [#allocation4], %s353
        %s355 = sand.u32 %s146, 1
        %s356 = smul.addr %s355, 32
        %s357 = scalar_lea.vmem [#allocation11], %s356
        // Predicated region
        $region61: #{tpu_custom_call.1} parent=43 // pred_check
          %p358 = pneg %p159
        $region62: #{tpu_custom_call.1} parent=43 // pred_check_branch
          %360 = sbr.rel (%p358) target = $region64
        $region63: #{tpu_custom_call.1} parent=43 // pred_region
          %361 = dma.done %s354, 512
        $region64: #{tpu_custom_call.1} parent=43 // pred_fallthru
          _
        %s362 = sand.u32 %s23, 1
        %s363 = scalar_lea.sflag [#allocation4], %s362
        %s364 = sand.u32 %s174, 1
        %s365 = scalar_lea.vmem [#allocation12], %s364
        // Predicated region
        $region65: #{tpu_custom_call.1} parent=43 // pred_check
          %p366 = pneg %p187
        $region66: #{tpu_custom_call.1} parent=43 // pred_check_branch
          %368 = sbr.rel (%p366) target = $region68
        $region67: #{tpu_custom_call.1} parent=43 // pred_region
          %369 = dma.done %s363, 16
        $region68: #{tpu_custom_call.1} parent=43 // pred_fallthru
          _
        %p370 = pneg %p63
        %p371 = pneg %p60
        %p372 = pneg %p89
        %p373 = pneg %p86
        %p374 = pneg %p110
        %p375 = pneg %p107
        %p376 = pneg %p131
        %p377 = pneg %p128
        %s378 = sand.u32 %s23, 1
        %s379 = scalar_lea.sflag [#allocation4], %s378
        %s380 = sand.u32 %s146, 1
        %s381 = smul.addr %s380, 32
        %s382 = scalar_lea.vmem [#allocation11], %s381
        %p383 = pneg %p159
        %p384 = pneg %p156
        %s385 = sand.u32 %s23, 1
        %s386 = scalar_lea.sflag [#allocation4], %s385
        %s387 = sand.u32 %s174, 1
        %s388 = scalar_lea.vmem [#allocation12], %s387
        %p389 = pneg %p187
        %p390 = pneg %p184
        %p391 = pneg %p217
        %p392 = pneg %p214
        %s393 = sand.u32 %s204, 1
        %s394 = scalar_lea.sflag [#allocation5], %s393
        %s395 = sand.u32 %s204, 1
        %s396 = smul.addr %s395, 8
        %s397 = scalar_lea.vmem [#allocation13], %s396
        %s398 = smul.u32 2, %s28
        %s399 = smul.u32 2, %s28
        %s400 = smul.u32 2, %s28
        %p402 = scmp.eq.s32.totalorder %s29, 0
        %p403 = scmp.eq.s32.totalorder %s30, 0
        %p404 = pnand %p402, %p403
        %p405 = pneg %p404
        // Predicated region
        $region69: #{tpu_custom_call.1} parent=43 // pred_check
          _
        $region70: #{tpu_custom_call.1} parent=43 // pred_check_branch
          %407 = sbr.rel (%p404) target = $region72
        $region71: #{tpu_custom_call.1} parent=43 // pred_region
          %v408 = vld [vmem:[#allocation8] sm:$0x1]
          %v409 = vld [vmem:[#allocation9] sm:$0x1]
          %v410 = vld [vmem:[#allocation3] sm:$0xf]
          %v411 = vld [vmem:[#allocation3 + $0x4] sm:$0xf]
          %v412 = vunpack.c.l.bf16 %v410
          %v413 = vunpack.c.l.bf16 %v411
          %vm414 = vcmask 261120
          %v415 = vsel %vm414, %v412, 0.0
          %416 = vadd.xlane.f32.xlu0 %v415
          %v417 = vpop.xlane.xlu0 %416
          %v418 = vsel %vm414, %v413, 0.0
          %419 = vadd.xlane.f32.xlu0 %v418
          %v420 = vpop.xlane.xlu0 %419
          %v421 = vrcp.pop 32.0
          %v422 = vmul.f32 %v417, %v421
          %v423 = vmul.f32 %v420, %v421
          %v424 = vsub.f32 %v412, %v422
          %v425 = vsub.f32 %v413, %v423
          %v426 = vmul.f32 %v424, %v424
          %v427 = vmul.f32 %v425, %v425
          %v428 = vsel %vm414, %v426, 0.0
          %429 = vadd.xlane.f32.xlu0 %v428
          %v430 = vpop.xlane.xlu0 %429
          %v431 = vsel %vm414, %v427, 0.0
          %432 = vadd.xlane.f32.xlu0 %v431
          %v433 = vpop.xlane.xlu0 %432
          %v434 = vmul.f32 %v430, %v421
          %v435 = vmul.f32 %v433, %v421
          %v436 = vadd.f32 %v434, 1e-05
          %v437 = vadd.f32 %v435, 1e-05
          %v438 = vrsqrt.pop %v436
          %v439 = vrsqrt.pop %v437
          %v440 = vmul.f32 %v424, %v438
          %v441 = vmul.f32 %v425, %v439
          %v443 = vlaneseq
          %v444 = vshrl.u32 %v443, 7
          %v445 = vsub.s32 0, %v444
          %v446 = vrot.slane %v408, %v445
          %v448 = vmul.f32 %v440, %v446
          %v449 = vmul.f32 %v441, %v446
          %v451 = vlaneseq
          %v452 = vshrl.u32 %v451, 7
          %v453 = vsub.s32 0, %v452
          %v454 = vrot.slane %v409, %v453
          %v456 = vadd.f32 %v448, %v454
          %v457 = vadd.f32 %v449, %v454
          %v458 = vpack.c.bf16 %v457, %v456
          %459 = vst.msk [vmem:[#allocation2] sm:$0xff] %vm414, %v458
          %v460 = vld [vmem:[#allocation6] sm:$0xf]
          %v461 = vld [vmem:[#allocation6 + $0x4] sm:$0xf]
          %v462 = vunpack.c.l.bf16 %v460
          %v463 = vunpack.c.l.bf16 %v461
          %v464 = vsel %vm414, %v462, 0.0
          %465 = vadd.xlane.f32.xlu0 %v464
          %v466 = vpop.xlane.xlu0 %465
          %v467 = vsel %vm414, %v463, 0.0
          %468 = vadd.xlane.f32.xlu0 %v467
          %v469 = vpop.xlane.xlu0 %468
          %v470 = vmul.f32 %v466, %v421
          %v471 = vmul.f32 %v469, %v421
          %v472 = vsub.f32 %v462, %v470
          %v473 = vsub.f32 %v463, %v471
          %v474 = vmul.f32 %v472, %v472
          %v475 = vmul.f32 %v473, %v473
          %v476 = vsel %vm414, %v474, 0.0
          %477 = vadd.xlane.f32.xlu0 %v476
          %v478 = vpop.xlane.xlu0 %477
          %v479 = vsel %vm414, %v475, 0.0
          %480 = vadd.xlane.f32.xlu0 %v479
          %v481 = vpop.xlane.xlu0 %480
          %v482 = vmul.f32 %v478, %v421
          %v483 = vmul.f32 %v481, %v421
          %v484 = vadd.f32 %v482, 1e-05
          %v485 = vadd.f32 %v483, 1e-05
          %v486 = vrsqrt.pop %v484
          %v487 = vrsqrt.pop %v485
          %v488 = vmul.f32 %v472, %v486
          %v489 = vmul.f32 %v473, %v487
          %v490 = vmul.f32 %v488, %v446
          %v491 = vmul.f32 %v489, %v446
          %v492 = vadd.f32 %v490, %v454
          %v493 = vadd.f32 %v491, %v454
          %v494 = vpack.c.bf16 %v493, %v492
          %496 = vrot.lane.b32.xlu0 %v494, 32
          %v497 = vpop.permute.xlu0 %496
          %vm499 = vcmask 523520
          %500 = vst.msk [vmem:[#allocation2] sm:$0xff] %vm499, %v497
        $region72: #{tpu_custom_call.1} parent=43 // pred_fallthru
          _
        %v501 = vld [vmem:[#allocation2] sm:$0xff]
        %v502 = vld [vmem:[%s357] sm:$0xf]
        %v503 = vld [vmem:[%s357 + $0x4] sm:$0xf]
        %v504 = vld [vmem:[%s357 + $0x8] sm:$0xf]
        %v505 = vld [vmem:[%s357 + $0xc] sm:$0xf]
        %v506 = vld [vmem:[%s357 + $0x10] sm:$0xf]
        %v507 = vld [vmem:[%s357 + $0x14] sm:$0xf]
        %v508 = vld [vmem:[%s357 + $0x18] sm:$0xf]
        %v509 = vld [vmem:[%s357 + $0x1c] sm:$0xf]
        %v510 = vld [vmem:[%s365] sm:$0x1]
        %v512 = vlaneseq
        %v513 = vshrl.u32 %v512, 7
        %v514 = vsub.s32 0, %v513
        %v515 = vrot.slane %v510, %v514
        %v525 = vunpack.c.l.b16 %v502
        %v526 = vunpack.c.l.b16 %v503
        %v527 = vunpack.c.l.b16 %v504
        %v528 = vunpack.c.l.b16 %v505
        %v529 = vunpack.c.l.b16 %v506
        %v530 = vunpack.c.l.b16 %v507
        %v531 = vunpack.c.l.b16 %v508
        %v532 = vunpack.c.l.b16 %v509
        %v533 = vpack.c.b16 %v526, %v525
        %v534 = vpack.c.b16 %v528, %v527
        %v535 = vpack.c.b16 %v530, %v529
        %v536 = vpack.c.b16 %v532, %v531
        %vm541 = vcmask 523264
        %v543 = vsel %vm541, %v501, 0
        %545 = vmatprep.subr.bf16.mxu0 0
        %546 = vmatpush1.bf16.msra.mxu0 %v533
        %547 = vmatprep.subr.bf16.mxu0 0
        %548 = vmatpush1.bf16.msra.mxu0 %v534
        %549 = vmatprep.subr.bf16.mxu0 0
        %550 = vmatpush1.bf16.msra.mxu0 %v535
        %551 = vmatprep.subr.bf16.mxu0 0
        %552 = vmatpush1.bf16.msra.mxu0 %v536
        %553 = vmatprep.subr.bf16.mxu0 0
        %554 = vmatpush1.bf16.msra.mxu0 0
        %555 = vmatprep.subr.bf16.mxu0 0
        %556 = vmatpush1.bf16.msra.mxu0 0
        %557 = vmatprep.subr.bf16.mxu0 0
        %558 = vmatpush1.bf16.msra.mxu0 0
        %559 = vmatprep.subr.bf16.mxu0 0
        %560 = vmatpush1.bf16.msra.mxu0 0
        %561 = vmatprep.subr.bf16.mxu0 0
        %562 = vmatpush1.bf16.msra.mxu0 0
        %563 = vmatprep.subr.bf16.mxu0 0
        %564 = vmatpush1.bf16.msra.mxu0 0
        %565 = vmatprep.subr.bf16.mxu0 0
        %566 = vmatpush1.bf16.msra.mxu0 0
        %567 = vmatprep.subr.bf16.mxu0 0
        %568 = vmatpush1.bf16.msra.mxu0 0
        %569 = vmatprep.subr.bf16.mxu0 0
        %570 = vmatpush1.bf16.msra.mxu0 0
        %571 = vmatprep.subr.bf16.mxu0 0
        %572 = vmatpush1.bf16.msra.mxu0 0
        %573 = vmatprep.subr.bf16.mxu0 0
        %574 = vmatpush1.bf16.msra.mxu0 0
        %575 = vmatprep.subr.bf16.mxu0 0
        %576 = vmatpush1.bf16.msra.mxu0 0
        %577 = vmatprep.mubr.bf16.mxu0 0
        %578 = vmatmul.mubr.bf16.gmra.mrb[0].mxu0 %v543
        %v579 = vpop.f32.mrb[0].mxu0
        %v580 = vadd.f32 %v515, %v579
        %v581 = vpop.f32.mrb[0].mxu0
        %v582 = vpop.f32.mrb[0].mxu0
        %v583 = vadd.f32 %v515, %v582
        %v584 = vpop.f32.mrb[0].mxu0
        %585 = vdwg.mxu0
        %v586 = vpack.c.bf16 %v583, %v580
        %v588 = vunpack.c.l.b16 %v586
        %v589 = vunpack.c.h.b16 %v586
        %v590 = vpack.c.b16 %v588, %v588
        %v591 = vpack.c.b16 %v589, %v589
        %vm594 = vcmask 519168
        %595 = vst.msk [vmem:[%s397] sm:$0xf] %vm594, %v590
        %596 = vst.msk [vmem:[%s397 + $0x4] sm:$0xf] %vm594, %v591
        %s597 = sand.u32 %s204, 1
        %s598 = scalar_lea.sflag [#allocation5], %s597
        %s599 = sand.u32 %s204, 1
        %s600 = smul.addr %s599, 8
        %s601 = scalar_lea.vmem [#allocation13], %s600
        // Predicated region
        $region73: #{tpu_custom_call.1} parent=43 // pred_check
          %p602 = pneg %p214
        $region74: #{tpu_custom_call.1} parent=43 // pred_check_branch
          %604 = sbr.rel (%p602) target = $region76
        $region75: #{tpu_custom_call.1} parent=43 // pred_region
          %s605 = smul.u32 2, %s28
          %s607 = ssub.s32 128, 128
          %608 = vsyncadd %s598, %s607
          %s609 = sadd.s32 %s30, %s605
          %s610 = smul.addr %s29, 2
          %s611 = sadd.s32 %s609, %s610
          %s612 = smul.addr %s611, 64
          %s613 = scalar_lea.hbm %s6, %s612
          %s614 = sshll.u32 %s601, 4
          %s615 = int_to_ptr.vmem [resolvable:$true] %s614
          %620 = dma.vmem_to_hbm [thread:$0]  %s615, 128, %s613, %s598, 64, 64, 4
        $region76: #{tpu_custom_call.1} parent=43 // pred_fallthru
          _
      $region44: #{tpu_custom_call.1} parent=5 // pred_fallthru
        _
      %p621 = scmp.le.s32.totalorder 2, %s18
      // Predicated region
      $region77: #{tpu_custom_call.1} parent=5 // pred_check
        %p622 = pneg %p621
      $region78: #{tpu_custom_call.1} parent=5 // pred_check_branch
        %624 = sbr.rel (%p622) target = $region80
      $region79: #{tpu_custom_call.1} parent=5 // pred_region
        %s625 = ssub.s32 %s18, 2
        // Predicated region
        $region81: #{tpu_custom_call.1} parent=79 // pred_check
          %p626 = pneg %p220
        $region82: #{tpu_custom_call.1} parent=79 // pred_check_branch
          %628 = sbr.rel (%p626) target = $region84
        $region83: #{tpu_custom_call.1} parent=79 // pred_region
          %s629 = sand.u32 %s205, 1
          %s630 = scalar_lea.sflag [#allocation5], %s629
          %s631 = sand.u32 %s205, 1
          %s632 = smul.addr %s631, 8
          %s633 = scalar_lea.vmem [#allocation13], %s632
          %634 = dma.done %s630, 128
        $region84: #{tpu_custom_call.1} parent=79 // pred_fallthru
          _
      $region80: #{tpu_custom_call.1} parent=5 // pred_fallthru
        _
    $region6: #{tpu_custom_call.1} parent=1 // loop_footer
      %s22 = sadd.s32 1, %s18
    $region7: #{tpu_custom_call.1} parent=1 // loop_footer_branch
      %17 = sbr.rel target = $region3
    $region8: #{tpu_custom_call.1} parent=1 // loop_exit
      _
    %635 = vsyncpa [#allocation4], 1
    %s636 = scalar_lea.sflag [#allocation4], 1
    %637 = vsyncpa %s636, 1
    %638 = vsyncpa [#allocation7], 1
    %639 = vsyncpa [#allocation10], 1
    %640 = vsyncpa [#allocation5], 1
    %s641 = scalar_lea.sflag [#allocation5], 1
    %642 = vsyncpa %s641, 1

</llo_original>
